<compile_context>
chip_gen: v7x
topology: tpu7x:2x2x1
jax: 0.10.0
libtpu: 0.0.40
codegen_flags: <defaults>
</compile_context>

<pallas_src>
import jax
import jax.numpy as jnp
from jax import lax
from jax.experimental import pallas as pl
from jax.experimental.pallas import tpu as pltpu

# Branch configuration of Inception1d: (kernel_size, out_channels)
_BRANCHES = [(1, 1), (3, 5), (5, 5), (7, 5), (9, 5), (11, 5), (13, 5), (15, 5)]
K_MAX = 15
PAD_MAX = (K_MAX - 1) // 2
_HALO = 128  # >= K_MAX - 1 and a multiple of 128 so in-kernel loads stay aligned


def _round_up(x, m):
    return ((x + m - 1) // m) * m


def _inception_kernel(w_ref, b_ref, x_ref, o_ref, cols_ref):
    # w_ref:    (C_out, K_MAX*C_in)  fused branch weights (tap-major, C_in minor)
    # b_ref:    (C_out, 1)           fused bias
    # x_ref:    (C_in, L_total)      halo-padded input row, resident per batch
    # o_ref:    (C_out, TL)          lane-dense output tile (TL % 128 == 0)
    # cols_ref: (K_MAX*C_in, TL)     VMEM im2col scratch (built in-kernel)
    c_in = x_ref.shape[0]
    tl = o_ref.shape[-1]

    # 128-aligned dynamic window covering this tile plus the halo.
    off = pl.multiple_of(pl.program_id(1) * tl, 128)
    xw = x_ref[:, pl.ds(off, tl + _HALO)]          # (C_in, TL + 128)

    # Build the column block in VMEM from static lane-shifted slices.
    for t in range(K_MAX):
        cols_ref[t * c_in:(t + 1) * c_in, :] = xw[:, t:t + tl]

    # Single 60-deep MXU contraction + VPU bias broadcast-add.
    y = jnp.dot(w_ref[...], cols_ref[...], preferred_element_type=jnp.float32)
    o_ref[...] = (y + b_ref[...]).astype(o_ref.dtype)


def make_params(key, in_channels, parallel_number, dtype=jnp.float32):
    """Deterministic PyTorch-style (uniform +/- 1/sqrt(fan_in)) init."""
    params = []
    for i, (k, co) in enumerate(_BRANCHES[:parallel_number]):
        kw, kb = jax.random.split(jax.random.fold_in(key, i))
        bound = 1.0 / (in_channels * k) ** 0.5
        w = jax.random.uniform(kw, (co, in_channels, k), dtype, -bound, bound)
        b = jax.random.uniform(kb, (co,), dtype, -bound, bound)
        params.append((w, b))
    return params


def inception1d_pallas(x, params, parallel_number, compute_dtype=None):
    """x: (N, C_in, L) float32 -> (N, 1 + 5*(parallel_number-1), L)."""
    assert 2 <= parallel_number <= 8
    N, C_in, L = x.shape

    # ---- fuse branches into (C_out, K*C_in) weights + (C_out, 1) bias ----
    ws, bs = [], []
    for (k, _co), (w, b) in zip(_BRANCHES[:parallel_number], params):
        pad = (K_MAX - k) // 2
        ws.append(jnp.pad(w, ((0, 0), (0, 0), (pad, pad))))
        bs.append(b)
    w_all = jnp.concatenate(ws, axis=0)                          # (C_out, C_in, K_MAX)
    C_out = w_all.shape[0]
    w2 = jnp.transpose(w_all, (0, 2, 1)).reshape(C_out, K_MAX * C_in)  # tap-major
    b2 = jnp.concatenate(bs, axis=0).reshape(C_out, 1).astype(jnp.float32)

    # ---- lane tiling: large lane-dense tiles, multiple of 128 ----
    lane_cap = 2048 if C_in <= 8 else 1024   # keep in-kernel window in vregs
    TL = min(lane_cap, _round_up(L, 128))
    L_out = _round_up(L, TL)
    n_l_tiles = L_out // TL
    L_total = L_out + _HALO

    # Halo-pad x once (7 zeros left, zeros right up to L_total). This is the
    # ONLY pre-processing pass; no im2col slab is materialized in HBM.
    # TODO(synk): for extremely long sequences (C_in*L_total*4B beyond the VMEM
    # budget) the resident per-batch row would need a windowed/manual-DMA spec.
    x_pad = jnp.pad(x, ((0, 0), (0, 0), (PAD_MAX, L_total - PAD_MAX - L)))

    cdt = jnp.float32 if compute_dtype is None else compute_dtype
    w2 = w2.astype(cdt)
    x_pad = x_pad.astype(cdt)

    out = pl.pallas_call(
        _inception_kernel,
        out_shape=jax.ShapeDtypeStruct((N, C_out, L_out), x.dtype),
        grid_spec=pltpu.PrefetchScalarGridSpec(
            num_scalar_prefetch=0,
            grid=(N, n_l_tiles),
            in_specs=[
                # fused weights: one small resident block
                pl.BlockSpec((C_out, K_MAX * C_in), lambda n, j: (0, 0)),
                # fused bias: resident
                pl.BlockSpec((C_out, 1), lambda n, j: (0, 0)),
                # halo-padded input row: resident across the lane-tile axis,
                # re-DMA'd only when the batch index changes
                pl.BlockSpec((None, C_in, L_total), lambda n, j: (n, 0, 0)),
            ],
            # output written directly in (N, C_out, L) layout, lane-dense tiles
            out_specs=pl.BlockSpec((None, C_out, TL), lambda n, j: (n, 0, j)),
            scratch_shapes=[pltpu.VMEM((K_MAX * C_in, TL), cdt)],
        ),
        compiler_params=pltpu.CompilerParams(
            dimension_semantics=("parallel", "parallel"),
        ),
    )(w2, b2, x_pad)

    return out[:, :, :L] if L_out != L else out


def inception1d_reference(x, params, parallel_number):
    """Pure-JAX reference matching the PyTorch forward exactly."""
    outs = []
    for (k, _co), (w, b) in zip(_BRANCHES[:parallel_number], params):
        p = (k - 1) // 2
        y = lax.conv_general_dilated(
            x, w, window_strides=(1,), padding=[(p, p)],
            dimension_numbers=("NCH", "OIH", "NCH"),
        )
        outs.append(y + b[None, :, None])
    return jnp.concatenate(outs, axis=1)


if __name__ == "__main__":
    key = jax.random.PRNGKey(0)
    N, C_IN, L = 2, 4, 16
    PARALLEL_NUMBER = 8  # -> 1 + 5*7 = 36 output channels

    kx, kp = jax.random.split(key)
    x = jax.random.normal(kx, (N, C_IN, L), jnp.float32)
    params = make_params(kp, C_IN, PARALLEL_NUMBER)

    out = jax.block_until_ready(inception1d_pallas(x, params, PARALLEL_NUMBER))
    ref = jax.block_until_ready(inception1d_reference(x, params, PARALLEL_NUMBER))

    assert out.shape == (N, 1 + 5 * (PARALLEL_NUMBER - 1), L), out.shape
    assert jnp.allclose(out, ref, atol=1e-4, rtol=1e-4), float(
        jnp.max(jnp.abs(out - ref))
    )
    print("KERNEL_OK")
</pallas_src>

<mosaic_0001>
module attributes {stable_mosaic.version = 11 : i64} {
  func.func @_inception_kernel(%arg0: i32, %arg1: i32, %arg2: memref<36x60xf32, #tpu.memory_space<vmem>>, %arg3: memref<36x1xf32, #tpu.memory_space<vmem>>, %arg4: memref<1x4x256xf32, #tpu.memory_space<vmem>>, %arg5: memref<1x36x128xf32, #tpu.memory_space<vmem>>, %arg6: memref<60x128xf32, #tpu.memory_space<vmem>>) attributes {dimension_semantics = [#tpu.dimension_semantics<parallel>, #tpu.dimension_semantics<parallel>], iteration_bounds = array<i64: 2, 1>, scalar_prefetch = 0 : i64, scratch_operands = 1 : i64, tpu.core_type = #tpu.core_type<tc>, window_params = [{pipeline_mode = #tpu.pipeline_mode<synchronous>, transform_indices = @transform_0, window_bounds = array<i64: 36, 60>}, {pipeline_mode = #tpu.pipeline_mode<synchronous>, transform_indices = @transform_1, window_bounds = array<i64: 36, 1>}, {transform_indices = @transform_2, window_bounds = array<i64: 1, 4, 256>}, {transform_indices = @transform_3, window_bounds = array<i64: 1, 36, 128>}]} {
    %c128_i32 = arith.constant 128 : i32
    %0 = arith.muli %arg1, %c128_i32 : i32
    %1 = tpu.assume_multiple %0, 128 : i32
    %c0 = arith.constant 0 : index
    %c0_0 = arith.constant 0 : index
    %2 = arith.index_cast %1 : i32 to index
    %3 = vector.load %arg4[%c0, %c0_0, %2] : memref<1x4x256xf32, #tpu.memory_space<vmem>>, vector<1x4x256xf32>
    %4 = vector.shape_cast %3 : vector<1x4x256xf32> to vector<4x256xf32>
    %5 = vector.extract_strided_slice %4 {offsets = [0, 0], sizes = [4, 128], strides = [1, 1]} : vector<4x256xf32> to vector<4x128xf32>
    %c0_1 = arith.constant 0 : index
    %c0_2 = arith.constant 0 : index
    %6 = vector.load %arg6[%c0_1, %c0_2] : memref<60x128xf32, #tpu.memory_space<vmem>>, vector<4x128xf32>
    tpu.vector_store %arg6[%c0_1, %c0_2], %5 {strides = array<i32>} : memref<60x128xf32, #tpu.memory_space<vmem>>, vector<4x128xf32>,
    %7 = vector.extract_strided_slice %4 {offsets = [0, 1], sizes = [4, 128], strides = [1, 1]} : vector<4x256xf32> to vector<4x128xf32>
    %c4 = arith.constant 4 : index
    %c0_3 = arith.constant 0 : index
    %8 = vector.load %arg6[%c4, %c0_3] : memref<60x128xf32, #tpu.memory_space<vmem>>, vector<4x128xf32>
    tpu.vector_store %arg6[%c4, %c0_3], %7 {strides = array<i32>} : memref<60x128xf32, #tpu.memory_space<vmem>>, vector<4x128xf32>,
    %9 = vector.extract_strided_slice %4 {offsets = [0, 2], sizes = [4, 128], strides = [1, 1]} : vector<4x256xf32> to vector<4x128xf32>
    %c8 = arith.constant 8 : index
    %c0_4 = arith.constant 0 : index
    %10 = vector.load %arg6[%c8, %c0_4] : memref<60x128xf32, #tpu.memory_space<vmem>>, vector<4x128xf32>
    tpu.vector_store %arg6[%c8, %c0_4], %9 {strides = array<i32>} : memref<60x128xf32, #tpu.memory_space<vmem>>, vector<4x128xf32>,
    %11 = vector.extract_strided_slice %4 {offsets = [0, 3], sizes = [4, 128], strides = [1, 1]} : vector<4x256xf32> to vector<4x128xf32>
    %c12 = arith.constant 12 : index
    %c0_5 = arith.constant 0 : index
    %12 = vector.load %arg6[%c12, %c0_5] : memref<60x128xf32, #tpu.memory_space<vmem>>, vector<4x128xf32>
    tpu.vector_store %arg6[%c12, %c0_5], %11 {strides = array<i32>} : memref<60x128xf32, #tpu.memory_space<vmem>>, vector<4x128xf32>,
    %13 = vector.extract_strided_slice %4 {offsets = [0, 4], sizes = [4, 128], strides = [1, 1]} : vector<4x256xf32> to vector<4x128xf32>
    %c16 = arith.constant 16 : index
    %c0_6 = arith.constant 0 : index
    %14 = vector.load %arg6[%c16, %c0_6] : memref<60x128xf32, #tpu.memory_space<vmem>>, vector<4x128xf32>
    tpu.vector_store %arg6[%c16, %c0_6], %13 {strides = array<i32>} : memref<60x128xf32, #tpu.memory_space<vmem>>, vector<4x128xf32>,
    %15 = vector.extract_strided_slice %4 {offsets = [0, 5], sizes = [4, 128], strides = [1, 1]} : vector<4x256xf32> to vector<4x128xf32>
    %c20 = arith.constant 20 : index
    %c0_7 = arith.constant 0 : index
    %16 = vector.load %arg6[%c20, %c0_7] : memref<60x128xf32, #tpu.memory_space<vmem>>, vector<4x128xf32>
    tpu.vector_store %arg6[%c20, %c0_7], %15 {strides = array<i32>} : memref<60x128xf32, #tpu.memory_space<vmem>>, vector<4x128xf32>,
    %17 = vector.extract_strided_slice %4 {offsets = [0, 6], sizes = [4, 128], strides = [1, 1]} : vector<4x256xf32> to vector<4x128xf32>
    %c24 = arith.constant 24 : index
    %c0_8 = arith.constant 0 : index
    %18 = vector.load %arg6[%c24, %c0_8] : memref<60x128xf32, #tpu.memory_space<vmem>>, vector<4x128xf32>
    tpu.vector_store %arg6[%c24, %c0_8], %17 {strides = array<i32>} : memref<60x128xf32, #tpu.memory_space<vmem>>, vector<4x128xf32>,
    %19 = vector.extract_strided_slice %4 {offsets = [0, 7], sizes = [4, 128], strides = [1, 1]} : vector<4x256xf32> to vector<4x128xf32>
    %c28 = arith.constant 28 : index
    %c0_9 = arith.constant 0 : index
    %20 = vector.load %arg6[%c28, %c0_9] : memref<60x128xf32, #tpu.memory_space<vmem>>, vector<4x128xf32>
    tpu.vector_store %arg6[%c28, %c0_9], %19 {strides = array<i32>} : memref<60x128xf32, #tpu.memory_space<vmem>>, vector<4x128xf32>,
    %21 = vector.extract_strided_slice %4 {offsets = [0, 8], sizes = [4, 128], strides = [1, 1]} : vector<4x256xf32> to vector<4x128xf32>
    %c32 = arith.constant 32 : index
    %c0_10 = arith.constant 0 : index
    %22 = vector.load %arg6[%c32, %c0_10] : memref<60x128xf32, #tpu.memory_space<vmem>>, vector<4x128xf32>
    tpu.vector_store %arg6[%c32, %c0_10], %21 {strides = array<i32>} : memref<60x128xf32, #tpu.memory_space<vmem>>, vector<4x128xf32>,
    %23 = vector.extract_strided_slice %4 {offsets = [0, 9], sizes = [4, 128], strides = [1, 1]} : vector<4x256xf32> to vector<4x128xf32>
    %c36 = arith.constant 36 : index
    %c0_11 = arith.constant 0 : index
    %24 = vector.load %arg6[%c36, %c0_11] : memref<60x128xf32, #tpu.memory_space<vmem>>, vector<4x128xf32>
    tpu.vector_store %arg6[%c36, %c0_11], %23 {strides = array<i32>} : memref<60x128xf32, #tpu.memory_space<vmem>>, vector<4x128xf32>,
    %25 = vector.extract_strided_slice %4 {offsets = [0, 10], sizes = [4, 128], strides = [1, 1]} : vector<4x256xf32> to vector<4x128xf32>
    %c40 = arith.constant 40 : index
    %c0_12 = arith.constant 0 : index
    %26 = vector.load %arg6[%c40, %c0_12] : memref<60x128xf32, #tpu.memory_space<vmem>>, vector<4x128xf32>
    tpu.vector_store %arg6[%c40, %c0_12], %25 {strides = array<i32>} : memref<60x128xf32, #tpu.memory_space<vmem>>, vector<4x128xf32>,
    %27 = vector.extract_strided_slice %4 {offsets = [0, 11], sizes = [4, 128], strides = [1, 1]} : vector<4x256xf32> to vector<4x128xf32>
    %c44 = arith.constant 44 : index
    %c0_13 = arith.constant 0 : index
    %28 = vector.load %arg6[%c44, %c0_13] : memref<60x128xf32, #tpu.memory_space<vmem>>, vector<4x128xf32>
    tpu.vector_store %arg6[%c44, %c0_13], %27 {strides = array<i32>} : memref<60x128xf32, #tpu.memory_space<vmem>>, vector<4x128xf32>,
    %29 = vector.extract_strided_slice %4 {offsets = [0, 12], sizes = [4, 128], strides = [1, 1]} : vector<4x256xf32> to vector<4x128xf32>
    %c48 = arith.constant 48 : index
    %c0_14 = arith.constant 0 : index
    %30 = vector.load %arg6[%c48, %c0_14] : memref<60x128xf32, #tpu.memory_space<vmem>>, vector<4x128xf32>
    tpu.vector_store %arg6[%c48, %c0_14], %29 {strides = array<i32>} : memref<60x128xf32, #tpu.memory_space<vmem>>, vector<4x128xf32>,
    %31 = vector.extract_strided_slice %4 {offsets = [0, 13], sizes = [4, 128], strides = [1, 1]} : vector<4x256xf32> to vector<4x128xf32>
    %c52 = arith.constant 52 : index
    %c0_15 = arith.constant 0 : index
    %32 = vector.load %arg6[%c52, %c0_15] : memref<60x128xf32, #tpu.memory_space<vmem>>, vector<4x128xf32>
    tpu.vector_store %arg6[%c52, %c0_15], %31 {strides = array<i32>} : memref<60x128xf32, #tpu.memory_space<vmem>>, vector<4x128xf32>,
    %33 = vector.extract_strided_slice %4 {offsets = [0, 14], sizes = [4, 128], strides = [1, 1]} : vector<4x256xf32> to vector<4x128xf32>
    %c56 = arith.constant 56 : index
    %c0_16 = arith.constant 0 : index
    %34 = vector.load %arg6[%c56, %c0_16] : memref<60x128xf32, #tpu.memory_space<vmem>>, vector<4x128xf32>
    tpu.vector_store %arg6[%c56, %c0_16], %33 {strides = array<i32>} : memref<60x128xf32, #tpu.memory_space<vmem>>, vector<4x128xf32>,
    %c0_17 = arith.constant 0 : index
    %c0_18 = arith.constant 0 : index
    %35 = vector.load %arg2[%c0_17, %c0_18] : memref<36x60xf32, #tpu.memory_space<vmem>>, vector<36x60xf32>
    %c0_19 = arith.constant 0 : index
    %c0_20 = arith.constant 0 : index
    %36 = vector.load %arg6[%c0_19, %c0_20] : memref<60x128xf32, #tpu.memory_space<vmem>>, vector<60x128xf32>
    %cst = arith.constant dense<0.000000e+00> : vector<36x128xf32>
    %37 = tpu.matmul %35, %36, %cst {dimension_numbers = #tpu.dot_dimension_numbers<[1], [0], [0], [1], [0, 0, 1, 1], [], []>} : vector<36x60xf32>, vector<60x128xf32>, vector<36x128xf32> -> vector<36x128xf32>
    %c0_21 = arith.constant 0 : index
    %c0_22 = arith.constant 0 : index
    %38 = vector.load %arg3[%c0_21, %c0_22] : memref<36x1xf32, #tpu.memory_space<vmem>>, vector<36x1xf32>
    %39 = vector.broadcast %38 : vector<36x1xf32> to vector<36x128xf32>
    %40 = arith.addf %37, %39 : vector<36x128xf32>
    %c0_23 = arith.constant 0 : index
    %c0_24 = arith.constant 0 : index
    %c0_25 = arith.constant 0 : index
    %41 = vector.load %arg5[%c0_23, %c0_24, %c0_25] : memref<1x36x128xf32, #tpu.memory_space<vmem>>, vector<1x36x128xf32>
    %42 = vector.shape_cast %41 : vector<1x36x128xf32> to vector<36x128xf32>
    %43 = vector.shape_cast %40 : vector<36x128xf32> to vector<1x36x128xf32>
    tpu.vector_store %arg5[%c0_23, %c0_24, %c0_25], %43 {strides = array<i32>} : memref<1x36x128xf32, #tpu.memory_space<vmem>>, vector<1x36x128xf32>,
    return
  }
  func.func @transform_0(%arg0: i32, %arg1: i32) -> (i32, i32) {
    %c0_i32 = arith.constant 0 : i32
    %c0_i32_0 = arith.constant 0 : i32
    %c0_i32_1 = arith.constant 0 : i32
    return %c0_i32, %c0_i32_0 : i32, i32
  }
  func.func @transform_1(%arg0: i32, %arg1: i32) -> (i32, i32) {
    %c0_i32 = arith.constant 0 : i32
    %c0_i32_0 = arith.constant 0 : i32
    %c0_i32_1 = arith.constant 0 : i32
    return %c0_i32, %c0_i32_0 : i32, i32
  }
  func.func @transform_2(%arg0: i32, %arg1: i32) -> (i32, i32, i32) {
    %c0_i32 = arith.constant 0 : i32
    %c0_i32_0 = arith.constant 0 : i32
    %c0_i32_1 = arith.constant 0 : i32
    return %arg0, %c0_i32, %c0_i32_0 : i32, i32, i32
  }
  func.func @transform_3(%arg0: i32, %arg1: i32) -> (i32, i32, i32) {
    %c0_i32 = arith.constant 0 : i32
    %c0_i32_0 = arith.constant 0 : i32
    return %arg0, %c0_i32, %arg1 : i32, i32, i32
  }
}

</mosaic_0001>

<llo_original>
// kernel: tpu_custom_call.1
$region0: #{tpu_custom_call.1}
  #allocation0 [shape = 'u32[]', space=smem, size = 0x4, offset = 0x4, fixed_abs, tag = 'smem constant byte address 0x4 - core index']
  #allocation1 [shape = 'u32[144,128]{1,0:T(1,128)}', space=vmem, size = 0x12000, scoped, tag = 'internal scratch']
  #allocation2 [shape = 'f32[60,128]{1,0:T(8,128)}', space=vmem, size = 0x8000, scoped, tag = 'scratch operand']
  %s0 = inlined_call_operand.vmem [shape: f32[36,60], index: 0, kind: input, shape index: {}]
  %s1 = inlined_call_operand.vmem [shape: f32[36,1], index: 1, kind: input, shape index: {}]
  %s2 = inlined_call_operand.hbm [shape: f32[2,4,256], index: 2, kind: input, shape index: {}]
  %s3 = inlined_call_operand.vmem [shape: f32[2,36,128], index: 3, kind: output, shape index: {}]
  %s4 = sld [smem:[#allocation0]]
  $region49: #{tpu_custom_call.1} parent=0
    _
  %s6 = ssub.s32 1, %s4
  %s7 = scalar_select 0, %s6, %s4
  $region1: #{tpu_custom_call.1} parent=0
    #allocation3 [shape = 'u8[8192]{0}', space=vmem, size = 0x2000, scoped, tag = 'input window, operand 2']
    #allocation4 [shape = 's32[2]{0}', space=sflag, size = 0x8, scoped, tag = 'scoped memory for tpu_custom_call.1']
    %8 = vsyncpa [#allocation4], 0
    %s9 = scalar_lea.sflag [#allocation4], 1
    %10 = vsyncpa %s9, 0
    loop: start=0, step=1, limit=4
    $region2: #{tpu_custom_call.1} parent=1 // loop_pre_header
      _
    $region3: #{tpu_custom_call.1} parent=1 // loop_header
      %s12 = sphi 0, %s16
      %p13 = scmp.ge.s32.totalorder %s12, 4
      %s19 = sphi 0, %s31
      %s20 = sphi 0, %s27
      %s21 = sphi 0, %s19
      %s22 = sphi 0, %s20
      %s23 = sphi 0, %s21
      %s24 = sphi 0, %s22
      %s32 = sphi 0, %s32
      %s34 = sphi 0, %s32
      %s35 = sphi 0, %s34
      %s49 = sphi 0, %s35
      %s53 = sphi 0, %s53
      %s55 = sphi 0, %s53
      %s56 = sphi 0, %s55
      %s70 = sphi 0, %s56
      %s76 = sphi 0, %s78
      %s79 = sphi 0, %s76
      %s80 = sphi 0, %s79
      %s96 = sphi 0, %s80
      %s104 = sphi 0, %s106
      %s107 = sphi 0, %s104
      %s108 = sphi 0, %s107
      %s124 = sphi 0, %s108
    $region4: #{tpu_custom_call.1} parent=1 // loop_header_branch
      %15 = sbr.rel (%p13) target = $region8
    $region5: #{tpu_custom_call.1} parent=1 // loop_body
      %s17 = ssub.s32 %s12, 1
      %s18 = ssub.s32 %s12, 2
      %s25 = sadd.s32 1, %s20
      %p26 = scmp.ge.s32.totalorder %s25, 1
      %s27 = scalar_select %p26, 0, %s25
      %s28 = sadd.s32 1, %s19
      %s29 = scalar_select %p26, %s28, %s19
      %p30 = scmp.ge.s32.totalorder %s29, 2
      %s31 = scalar_select %p30, 0, %s29
      %s33 = sadd.s32 %s32, 1
      %p36 = scmp.eq.s32.totalorder %s12, 1
      %p37 = scmp.ne.s32.totalorder %s32, %s34
      %p38 = scmp.eq.s32.totalorder %s12, 0
      %p39 = por %p37, %p38
      %p40 = scmp.ne.s32.totalorder %s32, %s34
      %p41 = scmp.eq.s32.totalorder %s17, 1
      %p42 = por %p40, %p41
      %p43 = scmp.ne.s32.totalorder %s34, %s35
      %p44 = scmp.eq.s32.totalorder %s17, 0
      %p45 = por %p43, %p44
      %p46 = scmp.ne.s32.totalorder %s34, %s35
      %p47 = scmp.eq.s32.totalorder %s18, 1
      %p48 = por %p46, %p47
      %p50 = scmp.ne.s32.totalorder %s35, %s49
      %p51 = scmp.eq.s32.totalorder %s18, 0
      %p52 = por %p50, %p51
      %s54 = sadd.s32 %s53, 1
      %p57 = scmp.eq.s32.totalorder %s12, 1
      %p58 = scmp.ne.s32.totalorder %s53, %s55
      %p59 = scmp.eq.s32.totalorder %s12, 0
      %p60 = por %p58, %p59
      %p61 = scmp.ne.s32.totalorder %s53, %s55
      %p62 = scmp.eq.s32.totalorder %s17, 1
      %p63 = por %p61, %p62
      %p64 = scmp.ne.s32.totalorder %s55, %s56
      %p65 = scmp.eq.s32.totalorder %s17, 0
      %p66 = por %p64, %p65
      %p67 = scmp.ne.s32.totalorder %s55, %s56
      %p68 = scmp.eq.s32.totalorder %s18, 1
      %p69 = por %p67, %p68
      %p71 = scmp.ne.s32.totalorder %s56, %s70
      %p72 = scmp.eq.s32.totalorder %s18, 0
      %p73 = por %p71, %p72
      %s74 = ssub.s32 %s19, %s31
      %p75 = scmp.eq.s32.totalorder %s74, 0
      %s77 = sadd.s32 %s76, 1
      %s78 = scalar_select %p75, %s76, %s77
      %p81 = pneg %p75
      %p82 = scmp.eq.s32.totalorder %s12, 1
      %p83 = por %p81, %p82
      %p84 = scmp.ne.s32.totalorder %s76, %s79
      %p85 = scmp.eq.s32.totalorder %s12, 0
      %p86 = por %p84, %p85
      %p87 = scmp.ne.s32.totalorder %s76, %s79
      %p88 = scmp.eq.s32.totalorder %s17, 1
      %p89 = por %p87, %p88
      %p90 = scmp.ne.s32.totalorder %s79, %s80
      %p91 = scmp.eq.s32.totalorder %s17, 0
      %p92 = por %p90, %p91
      %p93 = scmp.ne.s32.totalorder %s79, %s80
      %p94 = scmp.eq.s32.totalorder %s18, 1
      %p95 = por %p93, %p94
      %p97 = scmp.ne.s32.totalorder %s80, %s96
      %p98 = scmp.eq.s32.totalorder %s18, 0
      %p99 = por %p97, %p98
      %s100 = ssub.s32 %s19, %s31
      %s101 = ssub.s32 %s20, %s27
      %s102 = sor.u32 %s100, %s101
      %p103 = scmp.eq.s32.totalorder %s102, 0
      %s105 = sadd.s32 %s104, 1
      %s106 = scalar_select %p103, %s104, %s105
      %p109 = pneg %p103
      %p110 = scmp.eq.s32.totalorder %s12, 1
      %p111 = por %p109, %p110
      %p112 = scmp.ne.s32.totalorder %s104, %s107
      %p113 = scmp.eq.s32.totalorder %s12, 0
      %p114 = por %p112, %p113
      %p115 = scmp.ne.s32.totalorder %s104, %s107
      %p116 = scmp.eq.s32.totalorder %s17, 1
      %p117 = por %p115, %p116
      %p118 = scmp.ne.s32.totalorder %s107, %s108
      %p119 = scmp.eq.s32.totalorder %s17, 0
      %p120 = por %p118, %p119
      %p121 = scmp.ne.s32.totalorder %s107, %s108
      %p122 = scmp.eq.s32.totalorder %s18, 1
      %p123 = por %p121, %p122
      %p125 = scmp.ne.s32.totalorder %s108, %s124
      %p126 = scmp.eq.s32.totalorder %s18, 0
      %p127 = por %p125, %p126
      %p128 = scmp.le.s32.totalorder 1, %s12
      %p129 = scmp.lt.s32.totalorder %s12, 3
      %p130 = pnand %p128, %p129
      %p131 = pneg %p130
      // Predicated region
      $region9: #{tpu_custom_call.1} parent=5 // pred_check
        _
      $region10: #{tpu_custom_call.1} parent=5 // pred_check_branch
        %133 = sbr.rel (%p130) target = $region12
      $region11: #{tpu_custom_call.1} parent=5 // pred_region
        %s134 = ssub.s32 %s12, 1
        // Predicated region
        $region13: #{tpu_custom_call.1} parent=11 // pred_check
          %p135 = pneg %p45
        $region14: #{tpu_custom_call.1} parent=11 // pred_check_branch
          %137 = sbr.rel (%p135) target = $region16
        $region15: #{tpu_custom_call.1} parent=11 // pred_region
          _
        $region16: #{tpu_custom_call.1} parent=11 // pred_fallthru
          _
        // Predicated region
        $region17: #{tpu_custom_call.1} parent=11 // pred_check
          %p138 = pneg %p66
        $region18: #{tpu_custom_call.1} parent=11 // pred_check_branch
          %140 = sbr.rel (%p138) target = $region20
        $region19: #{tpu_custom_call.1} parent=11 // pred_region
          _
        $region20: #{tpu_custom_call.1} parent=11 // pred_fallthru
          _
      $region12: #{tpu_custom_call.1} parent=5 // pred_fallthru
        _
      %p141 = scmp.lt.s32.totalorder %s12, 2
      // Predicated region
      $region21: #{tpu_custom_call.1} parent=5 // pred_check
        %p142 = pneg %p141
      $region22: #{tpu_custom_call.1} parent=5 // pred_check_branch
        %144 = sbr.rel (%p142) target = $region24
      $region23: #{tpu_custom_call.1} parent=5 // pred_region
        // Predicated region
        $region25: #{tpu_custom_call.1} parent=23 // pred_check
          %p145 = pneg %p86
        $region26: #{tpu_custom_call.1} parent=23 // pred_check_branch
          %147 = sbr.rel (%p145) target = $region28
        $region27: #{tpu_custom_call.1} parent=23 // pred_region
          %s148 = sand.u32 %s76, 1
          %s149 = scalar_lea.sflag [#allocation4], %s148
          %s150 = sand.u32 %s76, 1
          %s151 = smul.addr %s150, 8
          %s152 = scalar_lea.vmem [#allocation3], %s151
          %s154 = ssub.s32 128, 128
          %155 = vsyncadd %s149, %s154
          %s156 = smul.addr %s19, 2
          %s157 = smul.addr %s156, 64
          %s158 = scalar_lea.hbm %s2, %s157
          %s160 = sshll.u32 %s152, 4
          %s161 = int_to_ptr.vmem [resolvable:$true] %s160
          %163 = dma.hbm_to_vmem [thread:$0]  %s158, 128, %s161, %s149
        $region28: #{tpu_custom_call.1} parent=23 // pred_fallthru
          _
      $region24: #{tpu_custom_call.1} parent=5 // pred_fallthru
        _
      %p164 = scmp.le.s32.totalorder 1, %s12
      %p165 = scmp.lt.s32.totalorder %s12, 3
      %p166 = pnand %p164, %p165
      %p167 = pneg %p166
      // Predicated region
      $region29: #{tpu_custom_call.1} parent=5 // pred_check
        _
      $region30: #{tpu_custom_call.1} parent=5 // pred_check_branch
        %169 = sbr.rel (%p166) target = $region32
      $region31: #{tpu_custom_call.1} parent=5 // pred_region
        %s170 = ssub.s32 %s12, 1
        %s171 = sand.u32 %s79, 1
        %s172 = scalar_lea.sflag [#allocation4], %s171
        %s173 = sand.u32 %s79, 1
        %s174 = smul.addr %s173, 8
        %s175 = scalar_lea.vmem [#allocation3], %s174
        // Predicated region
        $region33: #{tpu_custom_call.1} parent=31 // pred_check
          %p176 = pneg %p92
        $region34: #{tpu_custom_call.1} parent=31 // pred_check_branch
          %178 = sbr.rel (%p176) target = $region36
        $region35: #{tpu_custom_call.1} parent=31 // pred_region
          %179 = dma.done %s172, 128
        $region36: #{tpu_custom_call.1} parent=31 // pred_fallthru
          _
        %p180 = pneg %p45
        %p181 = pneg %p42
        %p182 = pneg %p66
        %p183 = pneg %p63
        %s184 = sand.u32 %s79, 1
        %s185 = scalar_lea.sflag [#allocation4], %s184
        %s186 = sand.u32 %s79, 1
        %s187 = smul.addr %s186, 8
        %s188 = scalar_lea.vmem [#allocation3], %s187
        %p189 = pneg %p92
        %p190 = pneg %p89
        %p191 = pneg %p120
        %p192 = pneg %p117
        %p193 = scmp.lt.s32.totalorder %s21, 1
        %s194 = scalar_select %p193, %s21, 1
        %p195 = scmp.lt.s32.totalorder %s22, 0
        %s196 = scalar_select %p195, %s22, 0
        %s197 = smul.addr %s194, 5
        %s198 = sadd.s32 %s196, %s197
        %s199 = smul.addr %s198, 8
        %s200 = scalar_lea.vmem %s3, %s199
        %p201 = scmp.lt.s32.totalorder %s21, 1
        %s202 = scalar_select %p201, %s21, 1
        %p203 = scmp.lt.s32.totalorder %s22, 0
        %s204 = scalar_select %p203, %s22, 0
        %s205 = smul.addr %s202, 5
        %s206 = sadd.s32 %s204, %s205
        %s207 = smul.addr %s206, 8
        %s208 = scalar_lea.vmem %s3, %s207
        %s209 = smul.u32 %s22, 128
        %s210 = sshra.s32 %s209, 7
        %s211 = sand.u32 %s209, 127
        %s212 = smul.addr %s210, 4
        %s213 = scalar_lea.vmem %s175, %s212 [#allocation3]
        %v214 = vld [vmem:[%s213] sm:$0xff]
        %215 = vst [vmem:[#allocation2] sm:$0xf] %v214
        %v217 = vcombine.high %v214, %v214
        %218 = vrot.lane.b32.xlu0 %v214, 127
        %v219 = vpop.permute.xlu0 %218
        %220 = vrot.lane.b32.xlu0 %v217, 127
        %v221 = vpop.permute.xlu0 %220
        %vm222 = vcmask 1039360
        %v223 = vsel %vm222, %v219, %v221
        %225 = vst [vmem:[#allocation2 + $0x4] sm:$0xf] %v223
        %226 = vrot.lane.b32.xlu0 %v214, 126
        %v227 = vpop.permute.xlu0 %226
        %228 = vrot.lane.b32.xlu0 %v217, 126
        %v229 = vpop.permute.xlu0 %228
        %vm230 = vcmask 1031168
        %v231 = vsel %vm230, %v227, %v229
        %233 = vst [vmem:[#allocation2 + $0x8] sm:$0xf] %v231
        %234 = vrot.lane.b32.xlu0 %v214, 125
        %v235 = vpop.permute.xlu0 %234
        %236 = vrot.lane.b32.xlu0 %v217, 125
        %v237 = vpop.permute.xlu0 %236
        %vm238 = vcmask 1022976
        %v239 = vsel %vm238, %v235, %v237
        %241 = vst [vmem:[#allocation2 + $0xc] sm:$0xf] %v239
        %242 = vrot.lane.b32.xlu0 %v214, 124
        %v243 = vpop.permute.xlu0 %242
        %244 = vrot.lane.b32.xlu0 %v217, 124
        %v245 = vpop.permute.xlu0 %244
        %vm246 = vcmask 1014784
        %v247 = vsel %vm246, %v243, %v245
        %249 = vst [vmem:[#allocation2 + $0x10] sm:$0xf] %v247
        %250 = vrot.lane.b32.xlu0 %v214, 123
        %v251 = vpop.permute.xlu0 %250
        %252 = vrot.lane.b32.xlu0 %v217, 123
        %v253 = vpop.permute.xlu0 %252
        %vm254 = vcmask 1006592
        %v255 = vsel %vm254, %v251, %v253
        %257 = vst [vmem:[#allocation2 + $0x14] sm:$0xf] %v255
        %258 = vrot.lane.b32.xlu0 %v214, 122
        %v259 = vpop.permute.xlu0 %258
        %260 = vrot.lane.b32.xlu0 %v217, 122
        %v261 = vpop.permute.xlu0 %260
        %vm262 = vcmask 998400
        %v263 = vsel %vm262, %v259, %v261
        %265 = vst [vmem:[#allocation2 + $0x18] sm:$0xf] %v263
        %266 = vrot.lane.b32.xlu0 %v214, 121
        %v267 = vpop.permute.xlu0 %266
        %268 = vrot.lane.b32.xlu0 %v217, 121
        %v269 = vpop.permute.xlu0 %268
        %vm270 = vcmask 990208
        %v271 = vsel %vm270, %v267, %v269
        %273 = vst [vmem:[#allocation2 + $0x1c] sm:$0xf] %v271
        %274 = vrot.lane.b32.xlu0 %v214, 120
        %v275 = vpop.permute.xlu0 %274
        %276 = vrot.lane.b32.xlu0 %v217, 120
        %v277 = vpop.permute.xlu0 %276
        %vm278 = vcmask 982016
        %v279 = vsel %vm278, %v275, %v277
        %281 = vst [vmem:[#allocation2 + $0x20] sm:$0xf] %v279
        %282 = vrot.lane.b32.xlu0 %v214, 119
        %v283 = vpop.permute.xlu0 %282
        %284 = vrot.lane.b32.xlu0 %v217, 119
        %v285 = vpop.permute.xlu0 %284
        %vm286 = vcmask 973824
        %v287 = vsel %vm286, %v283, %v285
        %289 = vst [vmem:[#allocation2 + $0x24] sm:$0xf] %v287
        %290 = vrot.lane.b32.xlu0 %v214, 118
        %v291 = vpop.permute.xlu0 %290
        %292 = vrot.lane.b32.xlu0 %v217, 118
        %v293 = vpop.permute.xlu0 %292
        %vm294 = vcmask 965632
        %v295 = vsel %vm294, %v291, %v293
        %297 = vst [vmem:[#allocation2 + $0x28] sm:$0xf] %v295
        %298 = vrot.lane.b32.xlu0 %v214, 117
        %v299 = vpop.permute.xlu0 %298
        %300 = vrot.lane.b32.xlu0 %v217, 117
        %v301 = vpop.permute.xlu0 %300
        %vm302 = vcmask 957440
        %v303 = vsel %vm302, %v299, %v301
        %305 = vst [vmem:[#allocation2 + $0x2c] sm:$0xf] %v303
        %306 = vrot.lane.b32.xlu0 %v214, 116
        %v307 = vpop.permute.xlu0 %306
        %308 = vrot.lane.b32.xlu0 %v217, 116
        %v309 = vpop.permute.xlu0 %308
        %vm310 = vcmask 949248
        %v311 = vsel %vm310, %v307, %v309
        %313 = vst [vmem:[#allocation2 + $0x30] sm:$0xf] %v311
        %314 = vrot.lane.b32.xlu0 %v214, 115
        %v315 = vpop.permute.xlu0 %314
        %316 = vrot.lane.b32.xlu0 %v217, 115
        %v317 = vpop.permute.xlu0 %316
        %vm318 = vcmask 941056
        %v319 = vsel %vm318, %v315, %v317
        %321 = vst [vmem:[#allocation2 + $0x34] sm:$0xf] %v319
        %322 = vrot.lane.b32.xlu0 %v214, 114
        %v323 = vpop.permute.xlu0 %322
        %324 = vrot.lane.b32.xlu0 %v217, 114
        %v325 = vpop.permute.xlu0 %324
        %vm326 = vcmask 932864
        %v327 = vsel %vm326, %v323, %v325
        %329 = vst [vmem:[#allocation2 + $0x38] sm:$0xf] %v327
        %v330 = vld [vmem:[%s0] sm:$0xff]
        %v331 = vld [vmem:[%s0 + $0x8] sm:$0xff]
        %v332 = vld [vmem:[%s0 + $0x10] sm:$0xff]
        %v333 = vld [vmem:[%s0 + $0x18] sm:$0xff]
        %v334 = vld [vmem:[%s0 + $0x20] sm:$0xf]
        %v335 = vld [vmem:[#allocation2] sm:$0xff]
        %v336 = vld [vmem:[#allocation2 + $0x8] sm:$0xff]
        %v337 = vld [vmem:[#allocation2 + $0x10] sm:$0xff]
        %v338 = vld [vmem:[#allocation2 + $0x18] sm:$0xff]
        %v339 = vld [vmem:[#allocation2 + $0x20] sm:$0xff]
        %v340 = vld [vmem:[#allocation2 + $0x28] sm:$0xff]
        %v341 = vld [vmem:[#allocation2 + $0x30] sm:$0xff]
        %v342 = vld [vmem:[#allocation2 + $0x38] sm:$0xf]
        %v343 = vld [vmem:[%s1] sm:$0xff]
        %v344 = vld [vmem:[%s1 + $0x8] sm:$0xff]
        %v345 = vld [vmem:[%s1 + $0x10] sm:$0xff]
        %v346 = vld [vmem:[%s1 + $0x18] sm:$0xff]
        %v347 = vld [vmem:[%s1 + $0x20] sm:$0xf]
        %349 = vset.pattern.permute.xlu0 0
        %350 = vperm.xlu0 %349, %v343
        %v351 = vpop.permute.xlu0 %350
        %354 = vset.pattern.permute.xlu0 0
        %355 = vperm.xlu0 %354, %v344
        %v356 = vpop.permute.xlu0 %355
        %359 = vset.pattern.permute.xlu0 0
        %360 = vperm.xlu0 %359, %v345
        %v361 = vpop.permute.xlu0 %360
        %364 = vset.pattern.permute.xlu0 0
        %365 = vperm.xlu0 %364, %v346
        %v366 = vpop.permute.xlu0 %365
        %369 = vset.pattern.permute.xlu0 0
        %370 = vperm.xlu0 %369, %v347
        %v371 = vpop.permute.xlu0 %370
        %vm373 = vcmask 490496
        %v375 = vsel %vm373, %v330, 0
        %v378 = vsel %vm373, %v331, 0
        %v381 = vsel %vm373, %v332, 0
        %v384 = vsel %vm373, %v333, 0
        %v387 = vsel %vm373, %v334, 0
        %vm389 = vcmask 1043456
        %v391 = vsel %vm389, %v342, 0
        %393 = vmatprep.subr.mxu0 0.0
        %394 = vmatpush1.msra.mxu0 %v335
        %395 = vmatprep.subr.mxu0 0.0
        %396 = vmatpush1.msra.mxu0 %v336
        %397 = vmatprep.subr.mxu0 0.0
        %398 = vmatpush1.msra.mxu0 %v337
        %399 = vmatprep.subr.mxu0 0.0
        %400 = vmatpush1.msra.mxu0 %v338
        %401 = vmatprep.subr.mxu0 0.0
        %402 = vmatpush1.msra.mxu0 %v339
        %403 = vmatprep.subr.mxu0 0.0
        %404 = vmatpush1.msra.mxu0 %v340
        %405 = vmatprep.subr.mxu0 0.0
        %406 = vmatpush1.msra.mxu0 %v341
        %407 = vmatprep.subr.mxu0 0.0
        %408 = vmatpush1.msra.mxu0 %v391
        %409 = vmatprep.subr.mxu0 0.0
        %410 = vmatpush1.msra.mxu0 0.0
        %411 = vmatprep.subr.mxu0 0.0
        %412 = vmatpush1.msra.mxu0 0.0
        %413 = vmatprep.subr.mxu0 0.0
        %414 = vmatpush1.msra.mxu0 0.0
        %415 = vmatprep.subr.mxu0 0.0
        %416 = vmatpush1.msra.mxu0 0.0
        %417 = vmatprep.subr.mxu0 0.0
        %418 = vmatpush1.msra.mxu0 0.0
        %419 = vmatprep.subr.mxu0 0.0
        %420 = vmatpush1.msra.mxu0 0.0
        %421 = vmatprep.subr.mxu0 0.0
        %422 = vmatpush1.msra.mxu0 0.0
        %423 = vmatprep.subr.mxu0 0.0
        %424 = vmatpush1.msra.mxu0 0.0
        %425 = vmatprep.subr.mxu0 0.0
        %426 = vmatpush1.msra.mxu0 0.0
        %427 = vmatprep.subr.mxu0 0.0
        %428 = vmatpush1.msra.mxu0 0.0
        %429 = vmatprep.subr.mxu0 0.0
        %430 = vmatpush1.msra.mxu0 0.0
        %431 = vmatprep.subr.mxu0 0.0
        %432 = vmatpush1.msra.mxu0 0.0
        %433 = vmatprep.subr.mxu0 0.0
        %434 = vmatpush1.msra.mxu0 0.0
        %435 = vmatprep.subr.mxu0 0.0
        %436 = vmatpush1.msra.mxu0 0.0
        %437 = vmatprep.subr.mxu0 0.0
        %438 = vmatpush1.msra.mxu0 0.0
        %439 = vmatprep.subr.mxu0 0.0
        %440 = vmatpush1.msra.mxu0 0.0
        %441 = vmatprep.subr.mxu0 0.0
        %442 = vmatpush1.msra.mxu0 0.0
        %443 = vmatprep.subr.mxu0 0.0
        %444 = vmatpush1.msra.mxu0 0.0
        %445 = vmatprep.subr.mxu0 0.0
        %446 = vmatpush1.msra.mxu0 0.0
        %447 = vmatprep.subr.mxu0 0.0
        %448 = vmatpush1.msra.mxu0 0.0
        %449 = vmatprep.subr.mxu0 0.0
        %450 = vmatpush1.msra.mxu0 0.0
        %451 = vmatprep.subr.mxu0 0.0
        %452 = vmatpush1.msra.mxu0 0.0
        %453 = vmatprep.subr.mxu0 0.0
        %454 = vmatpush1.msra.mxu0 0.0
        %455 = vmatprep.subr.mxu0 0.0
        %456 = vmatpush1.msra.mxu0 0.0
        %457 = vmatprep.mubr.f32.mxu0 0.0
        %458 = vmatmul.mubr.f32.gmra.mrb[0].mxu0 %v375
        %v459 = vpop.f32.mrb[0].mxu0
        %v460 = vadd.f32 %v351, %v459
        %v461 = vpop.f32.mrb[0].mxu0
        %462 = vmatprep.mubr.f32.mxu0 0.0
        %463 = vmatmul.mubr.f32.gmra.mrb[0].mxu0 %v378
        %v464 = vpop.f32.mrb[0].mxu0
        %v465 = vadd.f32 %v356, %v464
        %v466 = vpop.f32.mrb[0].mxu0
        %467 = vmatprep.mubr.f32.mxu0 0.0
        %468 = vmatmul.mubr.f32.gmra.mrb[0].mxu0 %v381
        %v469 = vpop.f32.mrb[0].mxu0
        %v470 = vadd.f32 %v361, %v469
        %v471 = vpop.f32.mrb[0].mxu0
        %472 = vmatprep.mubr.f32.mxu0 0.0
        %473 = vmatmul.mubr.f32.gmra.mrb[0].mxu0 %v384
        %v474 = vpop.f32.mrb[0].mxu0
        %v475 = vadd.f32 %v366, %v474
        %v476 = vpop.f32.mrb[0].mxu0
        %477 = vmatprep.mubr.f32.mxu0 0.0
        %478 = vmatmul.mubr.f32.gmra.mrb[0].mxu0 %v387
        %v479 = vpop.f32.mrb[0].mxu0
        %v480 = vadd.f32 %v371, %v479
        %v481 = vpop.f32.mrb[0].mxu0
        %482 = vdwg.mxu0
        %483 = vst [vmem:[%s208] sm:$0xff] %v460
        %484 = vst [vmem:[%s208 + $0x8] sm:$0xff] %v465
        %485 = vst [vmem:[%s208 + $0x10] sm:$0xff] %v470
        %486 = vst [vmem:[%s208 + $0x18] sm:$0xff] %v475
        %487 = vst [vmem:[%s208 + $0x20] sm:$0xf] %v480
        %p488 = scmp.lt.s32.totalorder %s21, 1
        %s489 = scalar_select %p488, %s21, 1
        %p490 = scmp.lt.s32.totalorder %s22, 0
        %s491 = scalar_select %p490, %s22, 0
        %s492 = smul.addr %s489, 5
        %s493 = sadd.s32 %s491, %s492
        %s494 = smul.addr %s493, 8
        %s495 = scalar_lea.vmem %s3, %s494
        // Predicated region
        $region37: #{tpu_custom_call.1} parent=31 // pred_check
          %p496 = pneg %p117
        $region38: #{tpu_custom_call.1} parent=31 // pred_check_branch
          %498 = sbr.rel (%p496) target = $region40
        $region39: #{tpu_custom_call.1} parent=31 // pred_region
          _
        $region40: #{tpu_custom_call.1} parent=31 // pred_fallthru
          _
      $region32: #{tpu_custom_call.1} parent=5 // pred_fallthru
        _
      %p499 = scmp.le.s32.totalorder 2, %s12
      // Predicated region
      $region41: #{tpu_custom_call.1} parent=5 // pred_check
        %p500 = pneg %p499
      $region42: #{tpu_custom_call.1} parent=5 // pred_check_branch
        %502 = sbr.rel (%p500) target = $region44
      $region43: #{tpu_custom_call.1} parent=5 // pred_region
        %s503 = ssub.s32 %s12, 2
        // Predicated region
        $region45: #{tpu_custom_call.1} parent=43 // pred_check
          %p504 = pneg %p123
        $region46: #{tpu_custom_call.1} parent=43 // pred_check_branch
          %506 = sbr.rel (%p504) target = $region48
        $region47: #{tpu_custom_call.1} parent=43 // pred_region
          %p507 = scmp.lt.s32.totalorder %s23, 1
          %s508 = scalar_select %p507, %s23, 1
          %p509 = scmp.lt.s32.totalorder %s24, 0
          %s510 = scalar_select %p509, %s24, 0
          %s511 = smul.addr %s508, 5
          %s512 = sadd.s32 %s510, %s511
          %s513 = smul.addr %s512, 8
          %s514 = scalar_lea.vmem %s3, %s513
        $region48: #{tpu_custom_call.1} parent=43 // pred_fallthru
          _
      $region44: #{tpu_custom_call.1} parent=5 // pred_fallthru
        _
    $region6: #{tpu_custom_call.1} parent=1 // loop_footer
      %s16 = sadd.s32 1, %s12
    $region7: #{tpu_custom_call.1} parent=1 // loop_footer_branch
      %11 = sbr.rel target = $region3
    $region8: #{tpu_custom_call.1} parent=1 // loop_exit
      _
    %515 = vsyncpa [#allocation4], 1
    %s516 = scalar_lea.sflag [#allocation4], 1
    %517 = vsyncpa %s516, 1

</llo_original>
